<compile_context>
chip_gen: v7x
topology: tpu7x:2x2x1
jax: 0.10.0
libtpu: 0.0.40
codegen_flags: <defaults>
</compile_context>

<pallas_src>
import jax
import jax.numpy as jnp
from jax.experimental import pallas as pl
from jax.experimental.pallas import tpu as pltpu

LANE = 128       # vreg lane width
SUBLANE = 8      # vreg sublane count (f32)
TB_MAX = 1024    # batch tile upper bound (sweep 512/1024/2048; VMEM use is tiny)


def _round_up(n, m):
    return ((n + m - 1) // m) * m


# ----------------------------------------------------------------------------- kernel
def dqn_kernel(x_ref, w1_ref, w2_ref, w3_ref, b_ref, o_ref):
    # Three back-to-back MXU matmuls (bf16 operands, f32 accumulation) with
    # f32 VPU bias-add + ReLU fused in between.  One batch tile per grid step;
    # weights / biases stay VMEM-resident across steps (constant index_maps).
    nout = o_ref.shape[-1]
    x = x_ref[...].astype(jnp.bfloat16)                     # (TB, in_dim) -> bf16 in-kernel
    b = b_ref[...]                                          # (8, 128) f32; rows 0/1/2 = b1/b2/b3
    h1 = jnp.dot(x, w1_ref[...], preferred_element_type=jnp.float32) + b[0:1, :]
    h1 = jnp.maximum(h1, 0.0).astype(jnp.bfloat16)
    h2 = jnp.dot(h1, w2_ref[...], preferred_element_type=jnp.float32) + b[1:2, :]
    h2 = jnp.maximum(h2, 0.0).astype(jnp.bfloat16)
    out = jnp.dot(h2, w3_ref[...], preferred_element_type=jnp.float32) + b[2:3, :nout]
    o_ref[...] = out.astype(o_ref.dtype)                    # (TB, out_dim) narrow (masked) store


# ----------------------------------------------------------------------------- wrapper
def prepare_params(params):
    """One-time param prep: pad only the hidden width to 128 lanes, cast weights to
    bf16, and pack the three biases into a single (8, 128) f32 operand.

    Padding is numerically free: padded hidden columns of w1/w2 are zero, so after
    ReLU(0 + 0) they stay 0 and the zero rows of w2/w3 contribute nothing.
    """
    w1, b1 = params["w1"], params["b1"]
    w2, b2 = params["w2"], params["b2"]
    w3, b3 = params["w3"], params["b3"]

    in_dim, hidden = w1.shape
    out_dim = w3.shape[1]
    hid_pad = _round_up(hidden, LANE)
    assert out_dim <= hid_pad, "bias packing assumes out_dim <= padded hidden width"

    def pad2(a, r, c, dtype):
        out = jnp.zeros((r, c), dtype)
        return out.at[: a.shape[0], : a.shape[1]].set(a.astype(dtype))

    b_all = jnp.zeros((SUBLANE, hid_pad), jnp.float32)
    b_all = b_all.at[0, :hidden].set(b1.reshape(-1).astype(jnp.float32))
    b_all = b_all.at[1, :hidden].set(b2.reshape(-1).astype(jnp.float32))
    b_all = b_all.at[2, :out_dim].set(b3.reshape(-1).astype(jnp.float32))

    return {
        "w1": pad2(w1, in_dim, hid_pad, jnp.bfloat16),     # (in_dim, 128)  bf16
        "w2": pad2(w2, hid_pad, hid_pad, jnp.bfloat16),    # (128, 128)     bf16
        "w3": pad2(w3, hid_pad, out_dim, jnp.bfloat16),    # (128, out_dim) bf16
        "b_all": b_all,                                    # (8, 128)       f32
        "in_dim": in_dim,
        "hidden": hidden,
        "out_dim": out_dim,
    }


def dqn_forward(x, prep):
    """x: (B, input_dim) f32.  prep: output of prepare_params().  Returns (B, out_dim) f32."""
    w1, w2, w3, b_all = prep["w1"], prep["w2"], prep["w3"], prep["b_all"]
    in_dim, hidden, out_dim = prep["in_dim"], prep["hidden"], prep["out_dim"]
    hid_pad = w2.shape[0]

    B = x.shape[0]
    # Only pad the batch up to a sublane multiple (<= 7 extra rows); no x lane padding.
    b_pad = _round_up(max(B, SUBLANE), SUBLANE)
    if b_pad != B:
        x_in = jnp.zeros((b_pad, in_dim), x.dtype).at[:B, :].set(x)
    else:
        x_in = x

    # Batch tile: tiny batches -> single tile (latency path); otherwise split into
    # >= 2 tiles (both TensorCores on v7x), capped at TB_MAX, with a cdiv edge tile.
    if b_pad <= SUBLANE:
        tb = b_pad
    else:
        tb = min(TB_MAX, _round_up((b_pad + 1) // 2, SUBLANE))
    grid_n = (b_pad + tb - 1) // tb

    # Cost estimate with the REAL (unpadded) dims so XLA can overlap correctly.
    flops = 2 * B * (in_dim * hidden + hidden * hidden + hidden * out_dim)
    bytes_accessed = (
        B * in_dim * x.dtype.itemsize
        + (w1.size + w2.size + w3.size) * 2
        + b_all.size * 4
        + B * out_dim * 4
    )

    out_p = pl.pallas_call(
        dqn_kernel,
        out_shape=jax.ShapeDtypeStruct((b_pad, out_dim), jnp.float32),
        grid=(grid_n,),
        in_specs=[
            pl.BlockSpec((tb, in_dim), lambda i: (i, 0)),        # x: one batch tile per step
            pl.BlockSpec((in_dim, hid_pad), lambda i: (0, 0)),   # w1: VMEM-resident
            pl.BlockSpec((hid_pad, hid_pad), lambda i: (0, 0)),  # w2: VMEM-resident
            pl.BlockSpec((hid_pad, out_dim), lambda i: (0, 0)),  # w3: VMEM-resident
            pl.BlockSpec((SUBLANE, hid_pad), lambda i: (0, 0)),  # packed biases
        ],
        out_specs=pl.BlockSpec((tb, out_dim), lambda i: (i, 0)), # real-width output
        compiler_params=pltpu.CompilerParams(
            dimension_semantics=("parallel",),                   # both TCs on v7x
        ),
        cost_estimate=pl.CostEstimate(
            flops=flops, transcendentals=0, bytes_accessed=bytes_accessed
        ),
    )(x_in, w1, w2, w3, b_all)

    # TODO(synk): for pure action selection, fuse argmax / epsilon-greedy into the
    # kernel epilogue to return int32 actions and avoid storing Q-values at all.
    return out_p[:B]


# ------------------------------------------------------------------- init + reference
def init_dqn_params(key, input_dim, output_dim, hidden=64):
    """PyTorch nn.Linear-style init (uniform +-1/sqrt(fan_in)); weights stored
    already transposed as (in_features, out_features)."""
    def linear(k, fan_in, fan_out):
        kw, kb = jax.random.split(k)
        bound = 1.0 / jnp.sqrt(fan_in)
        w = jax.random.uniform(kw, (fan_in, fan_out), jnp.float32, -bound, bound)
        b = jax.random.uniform(kb, (1, fan_out), jnp.float32, -bound, bound)
        return w, b

    k1, k2, k3 = jax.random.split(key, 3)
    w1, b1 = linear(k1, input_dim, hidden)
    w2, b2 = linear(k2, hidden, hidden)
    w3, b3 = linear(k3, hidden, output_dim)
    return {"w1": w1, "b1": b1, "w2": w2, "b2": b2, "w3": w3, "b3": b3}


def dqn_reference_bf16(x, params):
    """Reference using the same bf16 operands / f32 accumulation as the kernel."""
    f32 = jnp.float32
    xb = x.astype(jnp.bfloat16)
    w1 = params["w1"].astype(jnp.bfloat16)
    w2 = params["w2"].astype(jnp.bfloat16)
    w3 = params["w3"].astype(jnp.bfloat16)
    h1 = jnp.maximum(jnp.dot(xb, w1, preferred_element_type=f32) + params["b1"], 0.0)
    h1 = h1.astype(jnp.bfloat16)
    h2 = jnp.maximum(jnp.dot(h1, w2, preferred_element_type=f32) + params["b2"], 0.0)
    h2 = h2.astype(jnp.bfloat16)
    return jnp.dot(h2, w3, preferred_element_type=f32) + params["b3"]


def dqn_reference_f32(x, params):
    h1 = jnp.maximum(x @ params["w1"] + params["b1"], 0.0)
    h2 = jnp.maximum(h1 @ params["w2"] + params["b2"], 0.0)
    return h2 @ params["w3"] + params["b3"]


# ----------------------------------------------------------------------------- main
if __name__ == "__main__":
    key = jax.random.PRNGKey(0)
    kx, kp, kx2 = jax.random.split(key, 3)

    batch, input_dim, output_dim = 8, 16, 4
    x = jax.random.normal(kx, (batch, input_dim), jnp.float32)
    params = init_dqn_params(kp, input_dim, output_dim)
    prep = prepare_params(params)

    # Tiny-inference path (grid = 1).
    out = jax.block_until_ready(dqn_forward(x, prep))
    assert out.shape == (batch, output_dim)
    # Tight check against a bf16-consistent reference (same quantization as kernel).
    ref_bf16 = dqn_reference_bf16(x, params)
    assert jnp.allclose(out, ref_bf16, atol=5e-2, rtol=5e-2)
    # Loose sanity check vs. the pure-f32 reference (bf16 rounding tolerance;
    # deliberate precision choice for the MXU path).
    ref_f32 = dqn_reference_f32(x, params)
    assert jnp.allclose(out, ref_f32, atol=1.5e-1, rtol=1e-1)

    # Multi-tile path: non-multiple-of-8 batch, grid >= 2, cdiv edge handling.
    batch2 = 333
    x2 = jax.random.normal(kx2, (batch2, input_dim), jnp.float32)
    out2 = jax.block_until_ready(dqn_forward(x2, prep))
    assert out2.shape == (batch2, output_dim)
    ref2 = dqn_reference_bf16(x2, params)
    assert jnp.allclose(out2, ref2, atol=5e-2, rtol=5e-2)

    print("KERNEL_OK")
</pallas_src>

<mosaic_0001>
module attributes {stable_mosaic.version = 11 : i64} {
  func.func @dqn_kernel(%arg0: i32, %arg1: memref<8x16xf32, #tpu.memory_space<vmem>>, %arg2: memref<16x128xbf16, #tpu.memory_space<vmem>>, %arg3: memref<128x128xbf16, #tpu.memory_space<vmem>>, %arg4: memref<128x4xbf16, #tpu.memory_space<vmem>>, %arg5: memref<8x128xf32, #tpu.memory_space<vmem>>, %arg6: memref<8x4xf32, #tpu.memory_space<vmem>>) attributes {dimension_semantics = [#tpu.dimension_semantics<parallel>], iteration_bounds = array<i64: 1>, scalar_prefetch = 0 : i64, scratch_operands = 0 : i64, tpu.core_type = #tpu.core_type<tc>, window_params = [{transform_indices = @transform_0, window_bounds = array<i64: 8, 16>}, {pipeline_mode = #tpu.pipeline_mode<synchronous>, transform_indices = @transform_1, window_bounds = array<i64: 16, 128>}, {pipeline_mode = #tpu.pipeline_mode<synchronous>, transform_indices = @transform_2, window_bounds = array<i64: 128, 128>}, {pipeline_mode = #tpu.pipeline_mode<synchronous>, transform_indices = @transform_3, window_bounds = array<i64: 128, 4>}, {pipeline_mode = #tpu.pipeline_mode<synchronous>, transform_indices = @transform_4, window_bounds = array<i64: 8, 128>}, {transform_indices = @transform_5, window_bounds = array<i64: 8, 4>}]} {
    %c0 = arith.constant 0 : index
    %c0_0 = arith.constant 0 : index
    %0 = vector.load %arg1[%c0, %c0_0] : memref<8x16xf32, #tpu.memory_space<vmem>>, vector<8x16xf32>
    %1 = arith.truncf %0 : vector<8x16xf32> to vector<8x16xbf16>
    %c0_1 = arith.constant 0 : index
    %c0_2 = arith.constant 0 : index
    %2 = vector.load %arg5[%c0_1, %c0_2] : memref<8x128xf32, #tpu.memory_space<vmem>>, vector<8x128xf32>
    %c0_3 = arith.constant 0 : index
    %c0_4 = arith.constant 0 : index
    %3 = vector.load %arg2[%c0_3, %c0_4] : memref<16x128xbf16, #tpu.memory_space<vmem>>, vector<16x128xbf16>
    %cst = arith.constant dense<0.000000e+00> : vector<8x128xf32>
    %4 = tpu.matmul %1, %3, %cst {dimension_numbers = #tpu.dot_dimension_numbers<[1], [0], [0], [1], [0, 0, 1, 1], [], []>} : vector<8x16xbf16>, vector<16x128xbf16>, vector<8x128xf32> -> vector<8x128xf32>
    %5 = vector.extract_strided_slice %2 {offsets = [0, 0], sizes = [1, 128], strides = [1, 1]} : vector<8x128xf32> to vector<1x128xf32>
    %6 = vector.broadcast %5 : vector<1x128xf32> to vector<8x128xf32>
    %7 = arith.addf %4, %6 : vector<8x128xf32>
    %cst_5 = arith.constant 0.000000e+00 : f32
    %8 = vector.broadcast %cst_5 : f32 to vector<8x128xf32>
    %9 = arith.maximumf %7, %8 : vector<8x128xf32>
    %10 = arith.truncf %9 : vector<8x128xf32> to vector<8x128xbf16>
    %c0_6 = arith.constant 0 : index
    %c0_7 = arith.constant 0 : index
    %11 = vector.load %arg3[%c0_6, %c0_7] : memref<128x128xbf16, #tpu.memory_space<vmem>>, vector<128x128xbf16>
    %cst_8 = arith.constant dense<0.000000e+00> : vector<8x128xf32>
    %12 = tpu.matmul %10, %11, %cst_8 {dimension_numbers = #tpu.dot_dimension_numbers<[1], [0], [0], [1], [0, 0, 1, 1], [], []>} : vector<8x128xbf16>, vector<128x128xbf16>, vector<8x128xf32> -> vector<8x128xf32>
    %13 = vector.extract_strided_slice %2 {offsets = [1, 0], sizes = [1, 128], strides = [1, 1]} : vector<8x128xf32> to vector<1x128xf32>
    %14 = vector.broadcast %13 : vector<1x128xf32> to vector<8x128xf32>
    %15 = arith.addf %12, %14 : vector<8x128xf32>
    %cst_9 = arith.constant 0.000000e+00 : f32
    %16 = vector.broadcast %cst_9 : f32 to vector<8x128xf32>
    %17 = arith.maximumf %15, %16 : vector<8x128xf32>
    %18 = arith.truncf %17 : vector<8x128xf32> to vector<8x128xbf16>
    %c0_10 = arith.constant 0 : index
    %c0_11 = arith.constant 0 : index
    %19 = vector.load %arg4[%c0_10, %c0_11] : memref<128x4xbf16, #tpu.memory_space<vmem>>, vector<128x4xbf16>
    %cst_12 = arith.constant dense<0.000000e+00> : vector<8x4xf32>
    %20 = tpu.matmul %18, %19, %cst_12 {dimension_numbers = #tpu.dot_dimension_numbers<[1], [0], [0], [1], [0, 0, 1, 1], [], []>} : vector<8x128xbf16>, vector<128x4xbf16>, vector<8x4xf32> -> vector<8x4xf32>
    %21 = vector.extract_strided_slice %2 {offsets = [2, 0], sizes = [1, 4], strides = [1, 1]} : vector<8x128xf32> to vector<1x4xf32>
    %22 = vector.broadcast %21 : vector<1x4xf32> to vector<8x4xf32>
    %23 = arith.addf %20, %22 : vector<8x4xf32>
    %c0_13 = arith.constant 0 : index
    %c0_14 = arith.constant 0 : index
    %24 = vector.load %arg6[%c0_13, %c0_14] : memref<8x4xf32, #tpu.memory_space<vmem>>, vector<8x4xf32>
    tpu.vector_store %arg6[%c0_13, %c0_14], %23 {strides = array<i32>} : memref<8x4xf32, #tpu.memory_space<vmem>>, vector<8x4xf32>,
    return
  }
  func.func @transform_0(%arg0: i32) -> (i32, i32) {
    %c0_i32 = arith.constant 0 : i32
    %c0_i32_0 = arith.constant 0 : i32
    return %arg0, %c0_i32 : i32, i32
  }
  func.func @transform_1(%arg0: i32) -> (i32, i32) {
    %c0_i32 = arith.constant 0 : i32
    %c0_i32_0 = arith.constant 0 : i32
    %c0_i32_1 = arith.constant 0 : i32
    return %c0_i32, %c0_i32_0 : i32, i32
  }
  func.func @transform_2(%arg0: i32) -> (i32, i32) {
    %c0_i32 = arith.constant 0 : i32
    %c0_i32_0 = arith.constant 0 : i32
    %c0_i32_1 = arith.constant 0 : i32
    return %c0_i32, %c0_i32_0 : i32, i32
  }
  func.func @transform_3(%arg0: i32) -> (i32, i32) {
    %c0_i32 = arith.constant 0 : i32
    %c0_i32_0 = arith.constant 0 : i32
    %c0_i32_1 = arith.constant 0 : i32
    return %c0_i32, %c0_i32_0 : i32, i32
  }
  func.func @transform_4(%arg0: i32) -> (i32, i32) {
    %c0_i32 = arith.constant 0 : i32
    %c0_i32_0 = arith.constant 0 : i32
    %c0_i32_1 = arith.constant 0 : i32
    return %c0_i32, %c0_i32_0 : i32, i32
  }
  func.func @transform_5(%arg0: i32) -> (i32, i32) {
    %c0_i32 = arith.constant 0 : i32
    %c0_i32_0 = arith.constant 0 : i32
    return %arg0, %c0_i32 : i32, i32
  }
}

</mosaic_0001>

<llo_original>
// kernel: tpu_custom_call.1
$region0: #{tpu_custom_call.1}
  #allocation0 [shape = 'u32[]', space=smem, size = 0x4, offset = 0x4, fixed_abs, tag = 'smem constant byte address 0x4 - core index']
  #allocation1 [shape = 'u32[144,128]{1,0:T(1,128)}', space=vmem, size = 0x12000, scoped, tag = 'internal scratch']
  %s0 = inlined_call_operand.vmem [shape: f32[8,16], index: 0, kind: input, shape index: {}]
  %s1 = inlined_call_operand.hbm [shape: bf16[16,128], index: 1, kind: input, shape index: {}]
  %s2 = inlined_call_operand.vmem [shape: bf16[128,128], index: 2, kind: input, shape index: {}]
  %s3 = inlined_call_operand.vmem [shape: bf16[128,4], index: 3, kind: input, shape index: {}]
  %s4 = inlined_call_operand.vmem [shape: f32[8,128], index: 4, kind: input, shape index: {}]
  %s5 = inlined_call_operand.vmem [shape: f32[8,4], index: 5, kind: output, shape index: {}]
  %s6 = sld [smem:[#allocation0]]
  $region34: #{tpu_custom_call.1} parent=0
    _
  %s8 = ssub.s32 1, %s6
  %s9 = scalar_select 0, %s8, %s6
  $region1: #{tpu_custom_call.1} parent=0
    #allocation2 [shape = 'u8[4096]{0}', space=vmem, size = 0x1000, scoped, tag = 'input window, operand 1, single buffered']
    #allocation3 [shape = 's32[1]{0}', space=sflag, size = 0x4, scoped, tag = 'scoped memory for tpu_custom_call.1']
    %10 = vsyncpa [#allocation3], 0
    // Predicated region
    $region2: #{tpu_custom_call.1} parent=1 // pred_check
      _
    $region3: #{tpu_custom_call.1} parent=1 // pred_check_branch
      %12 = sbr.rel (0) target = $region5
    $region4: #{tpu_custom_call.1} parent=1 // pred_region
      _
    $region5: #{tpu_custom_call.1} parent=1 // pred_fallthru
      _
    // Predicated region
    $region6: #{tpu_custom_call.1} parent=1 // pred_check
      _
    $region7: #{tpu_custom_call.1} parent=1 // pred_check_branch
      %14 = sbr.rel (0) target = $region9
    $region8: #{tpu_custom_call.1} parent=1 // pred_region
      %s16 = ssub.s32 128, 128
      %17 = vsyncadd [#allocation3], %s16
      %s18 = sshll.u32 [#allocation2], 4
      %s19 = int_to_ptr.vmem [resolvable:$true] %s18
      %24 = dma.hbm_to_vmem [thread:$0]  %s1, 128, %s19, [#allocation3], 64, 64, 4
    $region9: #{tpu_custom_call.1} parent=1 // pred_fallthru
      _
    // Predicated region
    $region10: #{tpu_custom_call.1} parent=1 // pred_check
      _
    $region11: #{tpu_custom_call.1} parent=1 // pred_check_branch
      %26 = sbr.rel (0) target = $region13
    $region12: #{tpu_custom_call.1} parent=1 // pred_region
      _
    $region13: #{tpu_custom_call.1} parent=1 // pred_fallthru
      _
    // Predicated region
    $region14: #{tpu_custom_call.1} parent=1 // pred_check
      _
    $region15: #{tpu_custom_call.1} parent=1 // pred_check_branch
      %28 = sbr.rel (0) target = $region17
    $region16: #{tpu_custom_call.1} parent=1 // pred_region
      _
    $region17: #{tpu_custom_call.1} parent=1 // pred_fallthru
      _
    // Predicated region
    $region18: #{tpu_custom_call.1} parent=1 // pred_check
      _
    $region19: #{tpu_custom_call.1} parent=1 // pred_check_branch
      %30 = sbr.rel (0) target = $region21
    $region20: #{tpu_custom_call.1} parent=1 // pred_region
      _
    $region21: #{tpu_custom_call.1} parent=1 // pred_fallthru
      _
    // Predicated region
    $region22: #{tpu_custom_call.1} parent=1 // pred_check
      _
    $region23: #{tpu_custom_call.1} parent=1 // pred_check_branch
      %32 = sbr.rel (0) target = $region25
    $region24: #{tpu_custom_call.1} parent=1 // pred_region
      %33 = dma.done [#allocation3], 128
    $region25: #{tpu_custom_call.1} parent=1 // pred_fallthru
      _
    %v35 = vld [vmem:[%s0] sm:$0xff]
    %v36 = vpack.c.bf16 %v35, %v35
    %v37 = vld [vmem:[%s4] sm:$0xff]
    %v38 = vld [vmem:[#allocation2] sm:$0xf]
    %v39 = vld [vmem:[#allocation2 + $0x4] sm:$0xf]
    %v40 = vlaneseq
    %v41 = vshrl.u32 %v40, 7
    %v42 = vsub.s32 0, %v41
    %v43 = vrot.slane %v37, %v42
    %v46 = vunpack.c.l.b16 %v38
    %v47 = vunpack.c.l.b16 %v39
    %v48 = vpack.c.b16 %v47, %v46
    %vm50 = vcmask 130048
    %v52 = vsel %vm50, %v36, 0
    %54 = vmatprep.subr.bf16.mxu0 0
    %55 = vmatpush1.bf16.msra.mxu0 %v48
    %56 = vmatprep.subr.bf16.mxu0 0
    %57 = vmatpush1.bf16.msra.mxu0 0
    %58 = vmatprep.subr.bf16.mxu0 0
    %59 = vmatpush1.bf16.msra.mxu0 0
    %60 = vmatprep.subr.bf16.mxu0 0
    %61 = vmatpush1.bf16.msra.mxu0 0
    %62 = vmatprep.subr.bf16.mxu0 0
    %63 = vmatpush1.bf16.msra.mxu0 0
    %64 = vmatprep.subr.bf16.mxu0 0
    %65 = vmatpush1.bf16.msra.mxu0 0
    %66 = vmatprep.subr.bf16.mxu0 0
    %67 = vmatpush1.bf16.msra.mxu0 0
    %68 = vmatprep.subr.bf16.mxu0 0
    %69 = vmatpush1.bf16.msra.mxu0 0
    %70 = vmatprep.subr.bf16.mxu0 0
    %71 = vmatpush1.bf16.msra.mxu0 0
    %72 = vmatprep.subr.bf16.mxu0 0
    %73 = vmatpush1.bf16.msra.mxu0 0
    %74 = vmatprep.subr.bf16.mxu0 0
    %75 = vmatpush1.bf16.msra.mxu0 0
    %76 = vmatprep.subr.bf16.mxu0 0
    %77 = vmatpush1.bf16.msra.mxu0 0
    %78 = vmatprep.subr.bf16.mxu0 0
    %79 = vmatpush1.bf16.msra.mxu0 0
    %80 = vmatprep.subr.bf16.mxu0 0
    %81 = vmatpush1.bf16.msra.mxu0 0
    %82 = vmatprep.subr.bf16.mxu0 0
    %83 = vmatpush1.bf16.msra.mxu0 0
    %84 = vmatprep.subr.bf16.mxu0 0
    %85 = vmatpush1.bf16.msra.mxu0 0
    %86 = vmatprep.mubr.bf16.mxu0 0
    %87 = vmatmul.mubr.bf16.gmra.mrb[0].mxu0 %v52
    %v88 = vpop.f32.mrb[0].mxu0
    %v89 = vadd.f32 %v43, %v88
    %v90 = vpop.f32.mrb[0].mxu0
    %v91 = vpop.f32.mrb[0].mxu0
    %v92 = vpop.f32.mrb[0].mxu0
    %93 = vdwg.mxu0
    %v94 = vmax.f32 %v89, 0.0
    %v95 = vpack.c.bf16 %v94, %v94
    %v96 = vld [vmem:[%s2] sm:$0xf]
    %v97 = vld [vmem:[%s2 + $0x4] sm:$0xf]
    %v98 = vld [vmem:[%s2 + $0x8] sm:$0xf]
    %v99 = vld [vmem:[%s2 + $0xc] sm:$0xf]
    %v100 = vld [vmem:[%s2 + $0x10] sm:$0xf]
    %v101 = vld [vmem:[%s2 + $0x14] sm:$0xf]
    %v102 = vld [vmem:[%s2 + $0x18] sm:$0xf]
    %v103 = vld [vmem:[%s2 + $0x1c] sm:$0xf]
    %v104 = vld [vmem:[%s2 + $0x20] sm:$0xf]
    %v105 = vld [vmem:[%s2 + $0x24] sm:$0xf]
    %v106 = vld [vmem:[%s2 + $0x28] sm:$0xf]
    %v107 = vld [vmem:[%s2 + $0x2c] sm:$0xf]
    %v108 = vld [vmem:[%s2 + $0x30] sm:$0xf]
    %v109 = vld [vmem:[%s2 + $0x34] sm:$0xf]
    %v110 = vld [vmem:[%s2 + $0x38] sm:$0xf]
    %v111 = vld [vmem:[%s2 + $0x3c] sm:$0xf]
    %v112 = vlaneseq
    %v113 = vshrl.u32 %v112, 7
    %v114 = vsub.s32 1, %v113
    %v115 = vrot.slane %v37, %v114
    %v132 = vunpack.c.l.b16 %v96
    %v133 = vunpack.c.l.b16 %v97
    %v134 = vunpack.c.l.b16 %v98
    %v135 = vunpack.c.l.b16 %v99
    %v136 = vunpack.c.l.b16 %v100
    %v137 = vunpack.c.l.b16 %v101
    %v138 = vunpack.c.l.b16 %v102
    %v139 = vunpack.c.l.b16 %v103
    %v140 = vunpack.c.l.b16 %v104
    %v141 = vunpack.c.l.b16 %v105
    %v142 = vunpack.c.l.b16 %v106
    %v143 = vunpack.c.l.b16 %v107
    %v144 = vunpack.c.l.b16 %v108
    %v145 = vunpack.c.l.b16 %v109
    %v146 = vunpack.c.l.b16 %v110
    %v147 = vunpack.c.l.b16 %v111
    %v148 = vpack.c.b16 %v133, %v132
    %v149 = vpack.c.b16 %v135, %v134
    %v150 = vpack.c.b16 %v137, %v136
    %v151 = vpack.c.b16 %v139, %v138
    %v152 = vpack.c.b16 %v141, %v140
    %v153 = vpack.c.b16 %v143, %v142
    %v154 = vpack.c.b16 %v145, %v144
    %v155 = vpack.c.b16 %v147, %v146
    %164 = vmatprep.subr.bf16.mxu0 0
    %165 = vmatpush1.bf16.msra.mxu0 %v148
    %166 = vmatprep.subr.bf16.mxu0 0
    %167 = vmatpush1.bf16.msra.mxu0 %v149
    %168 = vmatprep.subr.bf16.mxu0 0
    %169 = vmatpush1.bf16.msra.mxu0 %v150
    %170 = vmatprep.subr.bf16.mxu0 0
    %171 = vmatpush1.bf16.msra.mxu0 %v151
    %172 = vmatprep.subr.bf16.mxu0 0
    %173 = vmatpush1.bf16.msra.mxu0 %v152
    %174 = vmatprep.subr.bf16.mxu0 0
    %175 = vmatpush1.bf16.msra.mxu0 %v153
    %176 = vmatprep.subr.bf16.mxu0 0
    %177 = vmatpush1.bf16.msra.mxu0 %v154
    %178 = vmatprep.subr.bf16.mxu0 0
    %179 = vmatpush1.bf16.msra.mxu0 %v155
    %180 = vmatprep.subr.bf16.mxu0 0
    %181 = vmatpush1.bf16.msra.mxu0 0
    %182 = vmatprep.subr.bf16.mxu0 0
    %183 = vmatpush1.bf16.msra.mxu0 0
    %184 = vmatprep.subr.bf16.mxu0 0
    %185 = vmatpush1.bf16.msra.mxu0 0
    %186 = vmatprep.subr.bf16.mxu0 0
    %187 = vmatpush1.bf16.msra.mxu0 0
    %188 = vmatprep.subr.bf16.mxu0 0
    %189 = vmatpush1.bf16.msra.mxu0 0
    %190 = vmatprep.subr.bf16.mxu0 0
    %191 = vmatpush1.bf16.msra.mxu0 0
    %192 = vmatprep.subr.bf16.mxu0 0
    %193 = vmatpush1.bf16.msra.mxu0 0
    %194 = vmatprep.subr.bf16.mxu0 0
    %195 = vmatpush1.bf16.msra.mxu0 0
    %196 = vmatprep.mubr.bf16.mxu0 0
    %197 = vmatmul.mubr.bf16.gmra.mrb[0].mxu0 %v95
    %v198 = vpop.f32.mrb[0].mxu0
    %v199 = vadd.f32 %v115, %v198
    %v200 = vpop.f32.mrb[0].mxu0
    %v201 = vpop.f32.mrb[0].mxu0
    %v202 = vpop.f32.mrb[0].mxu0
    %203 = vdwg.mxu0
    %v204 = vmax.f32 %v199, 0.0
    %v205 = vpack.c.bf16 %v204, %v204
    %v206 = vld [vmem:[%s3] sm:$0xf]
    %v207 = vld [vmem:[%s3 + $0x4] sm:$0xf]
    %v208 = vld [vmem:[%s3 + $0x8] sm:$0xf]
    %v209 = vld [vmem:[%s3 + $0xc] sm:$0xf]
    %v210 = vld [vmem:[%s3 + $0x10] sm:$0xf]
    %v211 = vld [vmem:[%s3 + $0x14] sm:$0xf]
    %v212 = vld [vmem:[%s3 + $0x18] sm:$0xf]
    %v213 = vld [vmem:[%s3 + $0x1c] sm:$0xf]
    %v214 = vld [vmem:[%s3 + $0x20] sm:$0xf]
    %v215 = vld [vmem:[%s3 + $0x24] sm:$0xf]
    %v216 = vld [vmem:[%s3 + $0x28] sm:$0xf]
    %v217 = vld [vmem:[%s3 + $0x2c] sm:$0xf]
    %v218 = vld [vmem:[%s3 + $0x30] sm:$0xf]
    %v219 = vld [vmem:[%s3 + $0x34] sm:$0xf]
    %v220 = vld [vmem:[%s3 + $0x38] sm:$0xf]
    %v221 = vld [vmem:[%s3 + $0x3c] sm:$0xf]
    %v222 = vlaneseq
    %v223 = vshrl.u32 %v222, 7
    %v224 = vsub.s32 2, %v223
    %v225 = vrot.slane %v37, %v224
    %v242 = vunpack.c.l.b16 %v206
    %v243 = vunpack.c.l.b16 %v207
    %v244 = vunpack.c.l.b16 %v208
    %v245 = vunpack.c.l.b16 %v209
    %v246 = vunpack.c.l.b16 %v210
    %v247 = vunpack.c.l.b16 %v211
    %v248 = vunpack.c.l.b16 %v212
    %v249 = vunpack.c.l.b16 %v213
    %v250 = vunpack.c.l.b16 %v214
    %v251 = vunpack.c.l.b16 %v215
    %v252 = vunpack.c.l.b16 %v216
    %v253 = vunpack.c.l.b16 %v217
    %v254 = vunpack.c.l.b16 %v218
    %v255 = vunpack.c.l.b16 %v219
    %v256 = vunpack.c.l.b16 %v220
    %v257 = vunpack.c.l.b16 %v221
    %v258 = vpack.c.b16 %v243, %v242
    %v259 = vpack.c.b16 %v245, %v244
    %v260 = vpack.c.b16 %v247, %v246
    %v261 = vpack.c.b16 %v249, %v248
    %v262 = vpack.c.b16 %v251, %v250
    %v263 = vpack.c.b16 %v253, %v252
    %v264 = vpack.c.b16 %v255, %v254
    %v265 = vpack.c.b16 %v257, %v256
    %274 = vmatprep.subr.bf16.mxu0 0
    %275 = vmatpush1.bf16.msra.mxu0 %v258
    %276 = vmatprep.subr.bf16.mxu0 0
    %277 = vmatpush1.bf16.msra.mxu0 %v259
    %278 = vmatprep.subr.bf16.mxu0 0
    %279 = vmatpush1.bf16.msra.mxu0 %v260
    %280 = vmatprep.subr.bf16.mxu0 0
    %281 = vmatpush1.bf16.msra.mxu0 %v261
    %282 = vmatprep.subr.bf16.mxu0 0
    %283 = vmatpush1.bf16.msra.mxu0 %v262
    %284 = vmatprep.subr.bf16.mxu0 0
    %285 = vmatpush1.bf16.msra.mxu0 %v263
    %286 = vmatprep.subr.bf16.mxu0 0
    %287 = vmatpush1.bf16.msra.mxu0 %v264
    %288 = vmatprep.subr.bf16.mxu0 0
    %289 = vmatpush1.bf16.msra.mxu0 %v265
    %290 = vmatprep.subr.bf16.mxu0 0
    %291 = vmatpush1.bf16.msra.mxu0 0
    %292 = vmatprep.subr.bf16.mxu0 0
    %293 = vmatpush1.bf16.msra.mxu0 0
    %294 = vmatprep.subr.bf16.mxu0 0
    %295 = vmatpush1.bf16.msra.mxu0 0
    %296 = vmatprep.subr.bf16.mxu0 0
    %297 = vmatpush1.bf16.msra.mxu0 0
    %298 = vmatprep.subr.bf16.mxu0 0
    %299 = vmatpush1.bf16.msra.mxu0 0
    %300 = vmatprep.subr.bf16.mxu0 0
    %301 = vmatpush1.bf16.msra.mxu0 0
    %302 = vmatprep.subr.bf16.mxu0 0
    %303 = vmatpush1.bf16.msra.mxu0 0
    %304 = vmatprep.subr.bf16.mxu0 0
    %305 = vmatpush1.bf16.msra.mxu0 0
    %306 = vmatprep.mubr.bf16.mxu0 0
    %307 = vmatmul.mubr.bf16.gmra.mrb[0].mxu0 %v205
    %v308 = vpop.f32.mrb[0].mxu0
    %v309 = vadd.f32 %v225, %v308
    %v310 = vpop.f32.mrb[0].mxu0
    %v311 = vpop.f32.mrb[0].mxu0
    %v312 = vpop.f32.mrb[0].mxu0
    %313 = vdwg.mxu0
    %vm314 = vcmask 31744
    %315 = vst.msk [vmem:[%s5] sm:$0xff] %vm314, %v309
    // Predicated region
    $region26: #{tpu_custom_call.1} parent=1 // pred_check
      _
    $region27: #{tpu_custom_call.1} parent=1 // pred_check_branch
      %317 = sbr.rel (0) target = $region29
    $region28: #{tpu_custom_call.1} parent=1 // pred_region
      _
    $region29: #{tpu_custom_call.1} parent=1 // pred_fallthru
      _
    // Predicated region
    $region30: #{tpu_custom_call.1} parent=1 // pred_check
      _
    $region31: #{tpu_custom_call.1} parent=1 // pred_check_branch
      %319 = sbr.rel (0) target = $region33
    $region32: #{tpu_custom_call.1} parent=1 // pred_region
      _
    $region33: #{tpu_custom_call.1} parent=1 // pred_fallthru
      _
    %320 = vsyncpa [#allocation3], 1

</llo_original>
